<compile_context>
chip_gen: v5e
topology: v5e:2x2
jax: 0.10.0
libtpu: 0.0.40
codegen_flags: <defaults>
</compile_context>

<pallas_src>
import functools
import math

import jax
import jax.numpy as jnp
from jax import lax
from jax.experimental import pallas as pl
from jax.experimental.pallas import tpu as pltpu


def _fused_attention_kernel(*refs, B, L, D, H, scale, mask_mode):
    """in_proj -> per-head SDPA (batched over B) -> out_proj, all in VMEM."""
    if mask_mode == "additive":
        x_ref, wi_ref, bi_ref, wo_ref, bo_ref, mask_ref, o_ref, oacc_ref = refs
    else:
        x_ref, wi_ref, bi_ref, wo_ref, bo_ref, o_ref, oacc_ref = refs
    Dh = D // H

    x = x_ref[...]          # (B, L, D) f32
    wi = wi_ref[...]        # (D, 3D)   pre-transposed weight
    wo = wo_ref[...]        # (D, D)

    # ---- in_proj: batched over B (weight broadcast along the batch dim) ----
    wi_b = jnp.broadcast_to(wi[None], (B, D, 3 * D))
    qkv = lax.dot_general(x, wi_b, (((2,), (1,)), ((0,), (0,))),
                          preferred_element_type=jnp.float32)
    qkv = qkv + bi_ref[...]                                   # (B, L, 3D)

    # ---- mask, built in-kernel (nothing DMA'd for causal / none paths) ----
    if mask_mode == "causal":
        row = lax.broadcasted_iota(jnp.int32, (1, L, L), 1)
        col = lax.broadcasted_iota(jnp.int32, (1, L, L), 2)
        keep = col <= row                                     # (1, L, L) bool
    elif mask_mode == "additive":
        add_mask = mask_ref[...][None]                        # (1, L, L) f32

    neg = jnp.float32(-1e30)

    # ---- per-head attention, batched over B via dot_general batch dims ----
    for h in range(H):      # H is small & static; unrolled at trace time
        q = qkv[:, :, h * Dh:(h + 1) * Dh]                    # (B, L, Dh)
        k = qkv[:, :, D + h * Dh:D + (h + 1) * Dh]            # (B, L, Dh)
        v = qkv[:, :, 2 * D + h * Dh:2 * D + (h + 1) * Dh]    # (B, L, Dh)

        # scores: contract head dims, batch over B — no explicit transpose
        s = lax.dot_general(q, k, (((2,), (2,)), ((0,), (0,))),
                            preferred_element_type=jnp.float32) * scale  # (B,L,L)
        if mask_mode == "causal":
            s = jnp.where(keep, s, neg)
        elif mask_mode == "additive":
            s = s + add_mask

        m = jnp.max(s, axis=-1, keepdims=True)
        p = jnp.exp(s - m)
        denom = jnp.sum(p, axis=-1, keepdims=True)
        p = p * pl.reciprocal(denom, approx=True)             # EUP vrcp

        o_h = lax.dot_general(p, v, (((2,), (1,)), ((0,), (0,))),
                              preferred_element_type=jnp.float32)        # (B,L,Dh)
        oacc_ref[:, :, h * Dh:(h + 1) * Dh] = o_h             # VMEM slab column

    # ---- out_proj on the lane-dense (B, L, D) slab ----
    o3 = oacc_ref[...]
    wo_b = jnp.broadcast_to(wo[None], (B, D, D))
    y = lax.dot_general(o3, wo_b, (((2,), (1,)), ((0,), (0,))),
                        preferred_element_type=jnp.float32) + bo_ref[...]
    o_ref[...] = y          # single lane-dense store (last dim = D)


def attention_forward(params, x, attn_mask=None, is_causal=False):
    """x: (B, L, D) float32.  attn_mask: optional (L, L) float additive mask."""
    B, L, D = x.shape
    H = params["num_heads"]
    Dh = D // H
    scale = 1.0 / math.sqrt(Dh)           # PyTorch SDPA default scale

    inputs = [
        x.astype(jnp.float32),
        params["in_w_t"],                 # (D, 3D) pre-transposed once at init
        params["in_b"].reshape(1, 3 * D),
        params["out_w_t"],                # (D, D)
        params["out_b"].reshape(1, D),
    ]
    in_specs = [
        pl.BlockSpec((B, L, D), lambda i: (0, 0, 0)),
        pl.BlockSpec((D, 3 * D), lambda i: (0, 0)),
        pl.BlockSpec((1, 3 * D), lambda i: (0, 0)),
        pl.BlockSpec((D, D), lambda i: (0, 0)),
        pl.BlockSpec((1, D), lambda i: (0, 0)),
    ]

    if attn_mask is not None:
        # TODO(synk): only a single (L, L) additive mask is supported (leading
        # broadcast dims of size 1 are squeezed); batched (B,H,L,L) masks are not.
        m = jnp.asarray(attn_mask, jnp.float32)
        m = m.reshape(m.shape[-2], m.shape[-1])
        mask_mode = "additive"
        inputs.append(m)
        in_specs.append(pl.BlockSpec((L, L), lambda i: (0, 0)))
    elif is_causal:
        mask_mode = "causal"
    else:
        mask_mode = "none"

    kernel = functools.partial(
        _fused_attention_kernel,
        B=B, L=L, D=D, H=H, scale=scale, mask_mode=mask_mode,
    )
    return pl.pallas_call(
        kernel,
        out_shape=jax.ShapeDtypeStruct((B, L, D), jnp.float32),
        grid_spec=pltpu.PrefetchScalarGridSpec(
            num_scalar_prefetch=0,
            grid=(1,),
            in_specs=in_specs,
            out_specs=pl.BlockSpec((B, L, D), lambda i: (0, 0, 0)),
            scratch_shapes=[pltpu.VMEM((B, L, D), jnp.float32)],
        ),
        compiler_params=pltpu.CompilerParams(dimension_semantics=("arbitrary",)),
    )(*inputs)


# ---------------------------------------------------------------------------
# Pure-JAX reference for correctness checking.
# ---------------------------------------------------------------------------
def attention_reference(params, x, attn_mask=None, is_causal=False):
    B, L, D = x.shape
    H = params["num_heads"]
    Dh = D // H
    qkv = x @ params["in_w_t"] + params["in_b"]
    qkv = qkv.reshape(B, L, 3, H, Dh).astype(jnp.float32)
    qkv = jnp.transpose(qkv, (2, 0, 3, 1, 4))          # (3, B, H, L, Dh)
    q, k, v = qkv[0], qkv[1], qkv[2]
    s = jnp.einsum("bhld,bhmd->bhlm", q, k) / math.sqrt(Dh)
    if attn_mask is not None:
        s = s + attn_mask.astype(jnp.float32)
    elif is_causal:
        s = jnp.where(jnp.tril(jnp.ones((L, L), dtype=bool)), s, jnp.float32(-1e30))
    p = jax.nn.softmax(s, axis=-1)
    o = jnp.einsum("bhlm,bhmd->bhld", p, v)
    o = jnp.transpose(o, (0, 2, 1, 3)).reshape(B, L, D)
    return o @ params["out_w_t"] + params["out_b"]


if __name__ == "__main__":
    B, L, dim, num_heads = 2, 8, 32, 4

    key = jax.random.PRNGKey(0)
    k1, k2, k3, k4, k5, k6 = jax.random.split(key, 6)

    # nn.Linear(dim, 3*dim): weight (3*dim, dim), bias (3*dim,); nn.Linear(dim, dim)
    in_w = jax.random.normal(k1, (3 * dim, dim), jnp.float32) * 0.05
    in_b = jax.random.normal(k2, (3 * dim,), jnp.float32) * 0.01
    out_w = jax.random.normal(k3, (dim, dim), jnp.float32) * 0.05
    out_b = jax.random.normal(k4, (dim,), jnp.float32) * 0.01

    params = {
        "num_heads": num_heads,
        # weights pre-transposed ONCE (avoids a per-call XLA transpose)
        "in_w_t": jnp.asarray(in_w.T),    # (dim, 3*dim)
        "in_b": in_b,
        "out_w_t": jnp.asarray(out_w.T),  # (dim, dim)
        "out_b": out_b,
    }

    x = jax.random.normal(k5, (B, L, dim), jnp.float32)

    # Tolerances relaxed slightly because the softmax denom uses the EUP
    # approximate reciprocal (pl.reciprocal(approx=True)).
    ATOL = RTOL = 2e-3

    # causal path
    out_c = jax.block_until_ready(attention_forward(params, x, attn_mask=None, is_causal=True))
    ref_c = attention_reference(params, x, attn_mask=None, is_causal=True)
    assert out_c.shape == (B, L, dim)
    assert jnp.allclose(out_c, ref_c, atol=ATOL, rtol=RTOL), "mismatch (causal)"

    # no-mask path
    out_n = jax.block_until_ready(attention_forward(params, x))
    ref_n = attention_reference(params, x)
    assert jnp.allclose(out_n, ref_n, atol=ATOL, rtol=RTOL), "mismatch (no mask)"

    # explicit additive-mask path
    add_mask = jax.random.normal(k6, (L, L), jnp.float32) * 0.5
    out_m = jax.block_until_ready(attention_forward(params, x, attn_mask=add_mask))
    ref_m = attention_reference(params, x, attn_mask=add_mask)
    assert jnp.allclose(out_m, ref_m, atol=ATOL, rtol=RTOL), "mismatch (additive mask)"

    print("KERNEL_OK")
</pallas_src>

<mosaic_0001>
module attributes {stable_mosaic.version = 11 : i64} {
  func.func @_fused_attention_kernel(%arg0: i32, %arg1: memref<2x8x32xf32, #tpu.memory_space<vmem>>, %arg2: memref<32x96xf32, #tpu.memory_space<vmem>>, %arg3: memref<1x96xf32, #tpu.memory_space<vmem>>, %arg4: memref<32x32xf32, #tpu.memory_space<vmem>>, %arg5: memref<1x32xf32, #tpu.memory_space<vmem>>, %arg6: memref<2x8x32xf32, #tpu.memory_space<vmem>>, %arg7: memref<2x8x32xf32, #tpu.memory_space<vmem>>) attributes {dimension_semantics = [#tpu.dimension_semantics<arbitrary>], iteration_bounds = array<i64: 1>, scalar_prefetch = 0 : i64, scratch_operands = 1 : i64, tpu.core_type = #tpu.core_type<tc>, window_params = [{pipeline_mode = #tpu.pipeline_mode<synchronous>, transform_indices = @transform_0, window_bounds = array<i64: 2, 8, 32>}, {pipeline_mode = #tpu.pipeline_mode<synchronous>, transform_indices = @transform_1, window_bounds = array<i64: 32, 96>}, {pipeline_mode = #tpu.pipeline_mode<synchronous>, transform_indices = @transform_2, window_bounds = array<i64: 1, 96>}, {pipeline_mode = #tpu.pipeline_mode<synchronous>, transform_indices = @transform_3, window_bounds = array<i64: 32, 32>}, {pipeline_mode = #tpu.pipeline_mode<synchronous>, transform_indices = @transform_4, window_bounds = array<i64: 1, 32>}, {pipeline_mode = #tpu.pipeline_mode<synchronous>, transform_indices = @transform_5, window_bounds = array<i64: 2, 8, 32>}]} {
    %c0 = arith.constant 0 : index
    %c0_0 = arith.constant 0 : index
    %c0_1 = arith.constant 0 : index
    %0 = vector.load %arg1[%c0, %c0_0, %c0_1] : memref<2x8x32xf32, #tpu.memory_space<vmem>>, vector<2x8x32xf32>
    %c0_2 = arith.constant 0 : index
    %c0_3 = arith.constant 0 : index
    %1 = vector.load %arg2[%c0_2, %c0_3] : memref<32x96xf32, #tpu.memory_space<vmem>>, vector<32x96xf32>
    %c0_4 = arith.constant 0 : index
    %c0_5 = arith.constant 0 : index
    %2 = vector.load %arg4[%c0_4, %c0_5] : memref<32x32xf32, #tpu.memory_space<vmem>>, vector<32x32xf32>
    %3 = vector.shape_cast %1 : vector<32x96xf32> to vector<1x32x96xf32>
    %4 = vector.shape_cast %3 : vector<1x32x96xf32> to vector<1x32x96xf32>
    %5 = vector.broadcast %4 : vector<1x32x96xf32> to vector<2x32x96xf32>
    %cst = arith.constant dense<0.000000e+00> : vector<2x8x96xf32>
    %6 = tpu.matmul %0, %5, %cst {dimension_numbers = #tpu.dot_dimension_numbers<[2], [1], [1], [2], [0, 0, 0, 1, 1, 2], [0], [0]>} : vector<2x8x32xf32>, vector<2x32x96xf32>, vector<2x8x96xf32> -> vector<2x8x96xf32>
    %c0_6 = arith.constant 0 : index
    %c0_7 = arith.constant 0 : index
    %7 = vector.load %arg3[%c0_6, %c0_7] : memref<1x96xf32, #tpu.memory_space<vmem>>, vector<1x96xf32>
    %8 = vector.shape_cast %7 : vector<1x96xf32> to vector<1x1x96xf32>
    %9 = vector.broadcast %8 : vector<1x1x96xf32> to vector<2x8x96xf32>
    %10 = arith.addf %6, %9 : vector<2x8x96xf32>
    %11 = tpu.iota {dimensions = array<i32: 1>} : vector<1x8x8xi32>
    %12 = tpu.iota {dimensions = array<i32: 2>} : vector<1x8x8xi32>
    %13 = arith.cmpi sle, %12, %11 : vector<1x8x8xi32>
    %14 = vector.extract_strided_slice %10 {offsets = [0, 0, 0], sizes = [2, 8, 8], strides = [1, 1, 1]} : vector<2x8x96xf32> to vector<2x8x8xf32>
    %15 = vector.extract_strided_slice %10 {offsets = [0, 0, 32], sizes = [2, 8, 8], strides = [1, 1, 1]} : vector<2x8x96xf32> to vector<2x8x8xf32>
    %16 = vector.extract_strided_slice %10 {offsets = [0, 0, 64], sizes = [2, 8, 8], strides = [1, 1, 1]} : vector<2x8x96xf32> to vector<2x8x8xf32>
    %cst_8 = arith.constant dense<0.000000e+00> : vector<2x8x8xf32>
    %17 = tpu.matmul %14, %15, %cst_8 {dimension_numbers = #tpu.dot_dimension_numbers<[2], [2], [1], [1], [0, 0, 0, 1, 1, 1], [0], [0]>} : vector<2x8x8xf32>, vector<2x8x8xf32>, vector<2x8x8xf32> -> vector<2x8x8xf32>
    %cst_9 = arith.constant 0.353553385 : f32
    %18 = vector.broadcast %cst_9 : f32 to vector<2x8x8xf32>
    %19 = arith.mulf %17, %18 : vector<2x8x8xf32>
    %cst_10 = arith.constant -1.000000e+30 : f32
    %20 = vector.shape_cast %13 : vector<1x8x8xi1> to vector<1x8x8xi1>
    %21 = vector.broadcast %20 : vector<1x8x8xi1> to vector<2x8x8xi1>
    %22 = vector.broadcast %cst_10 : f32 to vector<2x8x8xf32>
    %23 = arith.select %21, %19, %22 : vector<2x8x8xi1>, vector<2x8x8xf32>
    %cst_11 = arith.constant dense<0xFF800000> : vector<2x8xf32>
    %24 = vector.multi_reduction <maximumf>, %23, %cst_11 [2] : vector<2x8x8xf32> to vector<2x8xf32>
    %25 = vector.shape_cast %24 : vector<2x8xf32> to vector<2x8x1xf32>
    %26 = vector.broadcast %25 : vector<2x8x1xf32> to vector<2x8x8xf32>
    %27 = arith.subf %23, %26 : vector<2x8x8xf32>
    %28 = math.exp %27 : vector<2x8x8xf32>
    %cst_12 = arith.constant dense<0.000000e+00> : vector<2x8xf32>
    %29 = vector.multi_reduction <add>, %28, %cst_12 [2] : vector<2x8x8xf32> to vector<2x8xf32>
    %30 = vector.shape_cast %29 : vector<2x8xf32> to vector<2x8x1xf32>
    %31 = tpu.reciprocal %30 {approx = true} : vector<2x8x1xf32> -> vector<2x8x1xf32>
    %32 = vector.broadcast %31 : vector<2x8x1xf32> to vector<2x8x8xf32>
    %33 = arith.mulf %28, %32 : vector<2x8x8xf32>
    %cst_13 = arith.constant dense<0.000000e+00> : vector<2x8x8xf32>
    %34 = tpu.matmul %33, %16, %cst_13 {dimension_numbers = #tpu.dot_dimension_numbers<[2], [1], [1], [2], [0, 0, 0, 1, 1, 2], [0], [0]>} : vector<2x8x8xf32>, vector<2x8x8xf32>, vector<2x8x8xf32> -> vector<2x8x8xf32>
    %c0_14 = arith.constant 0 : index
    %c0_15 = arith.constant 0 : index
    %c0_16 = arith.constant 0 : index
    %35 = vector.load %arg7[%c0_14, %c0_15, %c0_16] : memref<2x8x32xf32, #tpu.memory_space<vmem>>, vector<2x8x8xf32>
    tpu.vector_store %arg7[%c0_14, %c0_15, %c0_16], %34 {strides = array<i32>} : memref<2x8x32xf32, #tpu.memory_space<vmem>>, vector<2x8x8xf32>,
    %36 = vector.extract_strided_slice %10 {offsets = [0, 0, 8], sizes = [2, 8, 8], strides = [1, 1, 1]} : vector<2x8x96xf32> to vector<2x8x8xf32>
    %37 = vector.extract_strided_slice %10 {offsets = [0, 0, 40], sizes = [2, 8, 8], strides = [1, 1, 1]} : vector<2x8x96xf32> to vector<2x8x8xf32>
    %38 = vector.extract_strided_slice %10 {offsets = [0, 0, 72], sizes = [2, 8, 8], strides = [1, 1, 1]} : vector<2x8x96xf32> to vector<2x8x8xf32>
    %cst_17 = arith.constant dense<0.000000e+00> : vector<2x8x8xf32>
    %39 = tpu.matmul %36, %37, %cst_17 {dimension_numbers = #tpu.dot_dimension_numbers<[2], [2], [1], [1], [0, 0, 0, 1, 1, 1], [0], [0]>} : vector<2x8x8xf32>, vector<2x8x8xf32>, vector<2x8x8xf32> -> vector<2x8x8xf32>
    %cst_18 = arith.constant 0.353553385 : f32
    %40 = vector.broadcast %cst_18 : f32 to vector<2x8x8xf32>
    %41 = arith.mulf %39, %40 : vector<2x8x8xf32>
    %cst_19 = arith.constant -1.000000e+30 : f32
    %42 = vector.shape_cast %13 : vector<1x8x8xi1> to vector<1x8x8xi1>
    %43 = vector.broadcast %42 : vector<1x8x8xi1> to vector<2x8x8xi1>
    %44 = vector.broadcast %cst_19 : f32 to vector<2x8x8xf32>
    %45 = arith.select %43, %41, %44 : vector<2x8x8xi1>, vector<2x8x8xf32>
    %cst_20 = arith.constant dense<0xFF800000> : vector<2x8xf32>
    %46 = vector.multi_reduction <maximumf>, %45, %cst_20 [2] : vector<2x8x8xf32> to vector<2x8xf32>
    %47 = vector.shape_cast %46 : vector<2x8xf32> to vector<2x8x1xf32>
    %48 = vector.broadcast %47 : vector<2x8x1xf32> to vector<2x8x8xf32>
    %49 = arith.subf %45, %48 : vector<2x8x8xf32>
    %50 = math.exp %49 : vector<2x8x8xf32>
    %cst_21 = arith.constant dense<0.000000e+00> : vector<2x8xf32>
    %51 = vector.multi_reduction <add>, %50, %cst_21 [2] : vector<2x8x8xf32> to vector<2x8xf32>
    %52 = vector.shape_cast %51 : vector<2x8xf32> to vector<2x8x1xf32>
    %53 = tpu.reciprocal %52 {approx = true} : vector<2x8x1xf32> -> vector<2x8x1xf32>
    %54 = vector.broadcast %53 : vector<2x8x1xf32> to vector<2x8x8xf32>
    %55 = arith.mulf %50, %54 : vector<2x8x8xf32>
    %cst_22 = arith.constant dense<0.000000e+00> : vector<2x8x8xf32>
    %56 = tpu.matmul %55, %38, %cst_22 {dimension_numbers = #tpu.dot_dimension_numbers<[2], [1], [1], [2], [0, 0, 0, 1, 1, 2], [0], [0]>} : vector<2x8x8xf32>, vector<2x8x8xf32>, vector<2x8x8xf32> -> vector<2x8x8xf32>
    %c0_23 = arith.constant 0 : index
    %c0_24 = arith.constant 0 : index
    %c8 = arith.constant 8 : index
    %57 = vector.load %arg7[%c0_23, %c0_24, %c8] : memref<2x8x32xf32, #tpu.memory_space<vmem>>, vector<2x8x8xf32>
    tpu.vector_store %arg7[%c0_23, %c0_24, %c8], %56 {strides = array<i32>} : memref<2x8x32xf32, #tpu.memory_space<vmem>>, vector<2x8x8xf32>,
    %58 = vector.extract_strided_slice %10 {offsets = [0, 0, 16], sizes = [2, 8, 8], strides = [1, 1, 1]} : vector<2x8x96xf32> to vector<2x8x8xf32>
    %59 = vector.extract_strided_slice %10 {offsets = [0, 0, 48], sizes = [2, 8, 8], strides = [1, 1, 1]} : vector<2x8x96xf32> to vector<2x8x8xf32>
    %60 = vector.extract_strided_slice %10 {offsets = [0, 0, 80], sizes = [2, 8, 8], strides = [1, 1, 1]} : vector<2x8x96xf32> to vector<2x8x8xf32>
    %cst_25 = arith.constant dense<0.000000e+00> : vector<2x8x8xf32>
    %61 = tpu.matmul %58, %59, %cst_25 {dimension_numbers = #tpu.dot_dimension_numbers<[2], [2], [1], [1], [0, 0, 0, 1, 1, 1], [0], [0]>} : vector<2x8x8xf32>, vector<2x8x8xf32>, vector<2x8x8xf32> -> vector<2x8x8xf32>
    %cst_26 = arith.constant 0.353553385 : f32
    %62 = vector.broadcast %cst_26 : f32 to vector<2x8x8xf32>
    %63 = arith.mulf %61, %62 : vector<2x8x8xf32>
    %cst_27 = arith.constant -1.000000e+30 : f32
    %64 = vector.shape_cast %13 : vector<1x8x8xi1> to vector<1x8x8xi1>
    %65 = vector.broadcast %64 : vector<1x8x8xi1> to vector<2x8x8xi1>
    %66 = vector.broadcast %cst_27 : f32 to vector<2x8x8xf32>
    %67 = arith.select %65, %63, %66 : vector<2x8x8xi1>, vector<2x8x8xf32>
    %cst_28 = arith.constant dense<0xFF800000> : vector<2x8xf32>
    %68 = vector.multi_reduction <maximumf>, %67, %cst_28 [2] : vector<2x8x8xf32> to vector<2x8xf32>
    %69 = vector.shape_cast %68 : vector<2x8xf32> to vector<2x8x1xf32>
    %70 = vector.broadcast %69 : vector<2x8x1xf32> to vector<2x8x8xf32>
    %71 = arith.subf %67, %70 : vector<2x8x8xf32>
    %72 = math.exp %71 : vector<2x8x8xf32>
    %cst_29 = arith.constant dense<0.000000e+00> : vector<2x8xf32>
    %73 = vector.multi_reduction <add>, %72, %cst_29 [2] : vector<2x8x8xf32> to vector<2x8xf32>
    %74 = vector.shape_cast %73 : vector<2x8xf32> to vector<2x8x1xf32>
    %75 = tpu.reciprocal %74 {approx = true} : vector<2x8x1xf32> -> vector<2x8x1xf32>
    %76 = vector.broadcast %75 : vector<2x8x1xf32> to vector<2x8x8xf32>
    %77 = arith.mulf %72, %76 : vector<2x8x8xf32>
    %cst_30 = arith.constant dense<0.000000e+00> : vector<2x8x8xf32>
    %78 = tpu.matmul %77, %60, %cst_30 {dimension_numbers = #tpu.dot_dimension_numbers<[2], [1], [1], [2], [0, 0, 0, 1, 1, 2], [0], [0]>} : vector<2x8x8xf32>, vector<2x8x8xf32>, vector<2x8x8xf32> -> vector<2x8x8xf32>
    %c0_31 = arith.constant 0 : index
    %c0_32 = arith.constant 0 : index
    %c16 = arith.constant 16 : index
    %79 = vector.load %arg7[%c0_31, %c0_32, %c16] : memref<2x8x32xf32, #tpu.memory_space<vmem>>, vector<2x8x8xf32>
    tpu.vector_store %arg7[%c0_31, %c0_32, %c16], %78 {strides = array<i32>} : memref<2x8x32xf32, #tpu.memory_space<vmem>>, vector<2x8x8xf32>,
    %80 = vector.extract_strided_slice %10 {offsets = [0, 0, 24], sizes = [2, 8, 8], strides = [1, 1, 1]} : vector<2x8x96xf32> to vector<2x8x8xf32>
    %81 = vector.extract_strided_slice %10 {offsets = [0, 0, 56], sizes = [2, 8, 8], strides = [1, 1, 1]} : vector<2x8x96xf32> to vector<2x8x8xf32>
    %82 = vector.extract_strided_slice %10 {offsets = [0, 0, 88], sizes = [2, 8, 8], strides = [1, 1, 1]} : vector<2x8x96xf32> to vector<2x8x8xf32>
    %cst_33 = arith.constant dense<0.000000e+00> : vector<2x8x8xf32>
    %83 = tpu.matmul %80, %81, %cst_33 {dimension_numbers = #tpu.dot_dimension_numbers<[2], [2], [1], [1], [0, 0, 0, 1, 1, 1], [0], [0]>} : vector<2x8x8xf32>, vector<2x8x8xf32>, vector<2x8x8xf32> -> vector<2x8x8xf32>
    %cst_34 = arith.constant 0.353553385 : f32
    %84 = vector.broadcast %cst_34 : f32 to vector<2x8x8xf32>
    %85 = arith.mulf %83, %84 : vector<2x8x8xf32>
    %cst_35 = arith.constant -1.000000e+30 : f32
    %86 = vector.shape_cast %13 : vector<1x8x8xi1> to vector<1x8x8xi1>
    %87 = vector.broadcast %86 : vector<1x8x8xi1> to vector<2x8x8xi1>
    %88 = vector.broadcast %cst_35 : f32 to vector<2x8x8xf32>
    %89 = arith.select %87, %85, %88 : vector<2x8x8xi1>, vector<2x8x8xf32>
    %cst_36 = arith.constant dense<0xFF800000> : vector<2x8xf32>
    %90 = vector.multi_reduction <maximumf>, %89, %cst_36 [2] : vector<2x8x8xf32> to vector<2x8xf32>
    %91 = vector.shape_cast %90 : vector<2x8xf32> to vector<2x8x1xf32>
    %92 = vector.broadcast %91 : vector<2x8x1xf32> to vector<2x8x8xf32>
    %93 = arith.subf %89, %92 : vector<2x8x8xf32>
    %94 = math.exp %93 : vector<2x8x8xf32>
    %cst_37 = arith.constant dense<0.000000e+00> : vector<2x8xf32>
    %95 = vector.multi_reduction <add>, %94, %cst_37 [2] : vector<2x8x8xf32> to vector<2x8xf32>
    %96 = vector.shape_cast %95 : vector<2x8xf32> to vector<2x8x1xf32>
    %97 = tpu.reciprocal %96 {approx = true} : vector<2x8x1xf32> -> vector<2x8x1xf32>
    %98 = vector.broadcast %97 : vector<2x8x1xf32> to vector<2x8x8xf32>
    %99 = arith.mulf %94, %98 : vector<2x8x8xf32>
    %cst_38 = arith.constant dense<0.000000e+00> : vector<2x8x8xf32>
    %100 = tpu.matmul %99, %82, %cst_38 {dimension_numbers = #tpu.dot_dimension_numbers<[2], [1], [1], [2], [0, 0, 0, 1, 1, 2], [0], [0]>} : vector<2x8x8xf32>, vector<2x8x8xf32>, vector<2x8x8xf32> -> vector<2x8x8xf32>
    %c0_39 = arith.constant 0 : index
    %c0_40 = arith.constant 0 : index
    %c24 = arith.constant 24 : index
    %101 = vector.load %arg7[%c0_39, %c0_40, %c24] : memref<2x8x32xf32, #tpu.memory_space<vmem>>, vector<2x8x8xf32>
    tpu.vector_store %arg7[%c0_39, %c0_40, %c24], %100 {strides = array<i32>} : memref<2x8x32xf32, #tpu.memory_space<vmem>>, vector<2x8x8xf32>,
    %c0_41 = arith.constant 0 : index
    %c0_42 = arith.constant 0 : index
    %c0_43 = arith.constant 0 : index
    %102 = vector.load %arg7[%c0_41, %c0_42, %c0_43] : memref<2x8x32xf32, #tpu.memory_space<vmem>>, vector<2x8x32xf32>
    %103 = vector.shape_cast %2 : vector<32x32xf32> to vector<1x32x32xf32>
    %104 = vector.shape_cast %103 : vector<1x32x32xf32> to vector<1x32x32xf32>
    %105 = vector.broadcast %104 : vector<1x32x32xf32> to vector<2x32x32xf32>
    %cst_44 = arith.constant dense<0.000000e+00> : vector<2x8x32xf32>
    %106 = tpu.matmul %102, %105, %cst_44 {dimension_numbers = #tpu.dot_dimension_numbers<[2], [1], [1], [2], [0, 0, 0, 1, 1, 2], [0], [0]>} : vector<2x8x32xf32>, vector<2x32x32xf32>, vector<2x8x32xf32> -> vector<2x8x32xf32>
    %c0_45 = arith.constant 0 : index
    %c0_46 = arith.constant 0 : index
    %107 = vector.load %arg5[%c0_45, %c0_46] : memref<1x32xf32, #tpu.memory_space<vmem>>, vector<1x32xf32>
    %108 = vector.shape_cast %107 : vector<1x32xf32> to vector<1x1x32xf32>
    %109 = vector.broadcast %108 : vector<1x1x32xf32> to vector<2x8x32xf32>
    %110 = arith.addf %106, %109 : vector<2x8x32xf32>
    %c0_47 = arith.constant 0 : index
    %c0_48 = arith.constant 0 : index
    %c0_49 = arith.constant 0 : index
    %111 = vector.load %arg6[%c0_47, %c0_48, %c0_49] : memref<2x8x32xf32, #tpu.memory_space<vmem>>, vector<2x8x32xf32>
    tpu.vector_store %arg6[%c0_47, %c0_48, %c0_49], %110 {strides = array<i32>} : memref<2x8x32xf32, #tpu.memory_space<vmem>>, vector<2x8x32xf32>,
    return
  }
  func.func @transform_0(%arg0: i32) -> (i32, i32, i32) {
    %c0_i32 = arith.constant 0 : i32
    %c0_i32_0 = arith.constant 0 : i32
    %c0_i32_1 = arith.constant 0 : i32
    %c0_i32_2 = arith.constant 0 : i32
    return %c0_i32, %c0_i32_0, %c0_i32_1 : i32, i32, i32
  }
  func.func @transform_1(%arg0: i32) -> (i32, i32) {
    %c0_i32 = arith.constant 0 : i32
    %c0_i32_0 = arith.constant 0 : i32
    %c0_i32_1 = arith.constant 0 : i32
    return %c0_i32, %c0_i32_0 : i32, i32
  }
  func.func @transform_2(%arg0: i32) -> (i32, i32) {
    %c0_i32 = arith.constant 0 : i32
    %c0_i32_0 = arith.constant 0 : i32
    %c0_i32_1 = arith.constant 0 : i32
    return %c0_i32, %c0_i32_0 : i32, i32
  }
  func.func @transform_3(%arg0: i32) -> (i32, i32) {
    %c0_i32 = arith.constant 0 : i32
    %c0_i32_0 = arith.constant 0 : i32
    %c0_i32_1 = arith.constant 0 : i32
    return %c0_i32, %c0_i32_0 : i32, i32
  }
  func.func @transform_4(%arg0: i32) -> (i32, i32) {
    %c0_i32 = arith.constant 0 : i32
    %c0_i32_0 = arith.constant 0 : i32
    %c0_i32_1 = arith.constant 0 : i32
    return %c0_i32, %c0_i32_0 : i32, i32
  }
  func.func @transform_5(%arg0: i32) -> (i32, i32, i32) {
    %c0_i32 = arith.constant 0 : i32
    %c0_i32_0 = arith.constant 0 : i32
    %c0_i32_1 = arith.constant 0 : i32
    %c0_i32_2 = arith.constant 0 : i32
    return %c0_i32, %c0_i32_0, %c0_i32_1 : i32, i32, i32
  }
}

</mosaic_0001>

<llo_original>
// kernel: tpu_custom_call.1
$region0: #{tpu_custom_call.1}
  #allocation0 [shape = 'u32[]', space=smem, size = 0x4, offset = 0x4, fixed_abs, tag = 'smem constant byte address 0x4 - core index']
  #allocation1 [shape = 'u32[72,128]{1,0:T(1,128)}', space=vmem, size = 0x9000, scoped, tag = 'internal scratch']
  #allocation2 [shape = 'f32[2,8,32]{2,1,0:T(8,128)}', space=vmem, size = 0x2000, scoped, tag = 'scratch operand']
  %s0 = inlined_call_operand.hbm [shape: f32[2,8,32], index: 0, kind: input, shape index: {}]
  %s1 = inlined_call_operand.hbm [shape: f32[32,96], index: 1, kind: input, shape index: {}]
  %s2 = inlined_call_operand.vmem [shape: f32[1,96], index: 2, kind: input, shape index: {}]
  %s3 = inlined_call_operand.hbm [shape: f32[32,32], index: 3, kind: input, shape index: {}]
  %s4 = inlined_call_operand.vmem [shape: f32[1,32], index: 4, kind: input, shape index: {}]
  %s5 = inlined_call_operand.hbm [shape: f32[2,8,32], index: 5, kind: output, shape index: {}]
  %s6 = sld [smem:[#allocation0]]
  $region42: #{tpu_custom_call.1} parent=0
    _
  %s8 = ssub.s32 1, %s6
  %s9 = scalar_select 0, %s8, %s6
  $region1: #{tpu_custom_call.1} parent=0
    #allocation3 [shape = 'u8[8192]{0}', space=vmem, size = 0x2000, scoped, tag = 'input window, operand 0, single buffered']
    #allocation4 [shape = 's32[1]{0}', space=sflag, size = 0x4, scoped, tag = 'scoped memory for tpu_custom_call.1']
    #allocation5 [shape = 's32[1]{0}', space=sflag, size = 0x4, scoped, tag = 'scoped memory for tpu_custom_call.1']
    #allocation6 [shape = 'u8[16384]{0}', space=vmem, size = 0x4000, scoped, tag = 'input window, operand 1, single buffered']
    #allocation7 [shape = 's32[1]{0}', space=sflag, size = 0x4, scoped, tag = 'scoped memory for tpu_custom_call.1']
    #allocation8 [shape = 'u8[16384]{0}', space=vmem, size = 0x4000, scoped, tag = 'input window, operand 3, single buffered']
    #allocation9 [shape = 'u8[8192]{0}', space=vmem, size = 0x2000, scoped, tag = 'output window, operand 0, single buffered']
    %10 = vsyncpa [#allocation4], 0
    %11 = vsyncpa [#allocation7], 0
    %12 = vsyncpa [#allocation5], 0
    // Predicated region
    $region2: #{tpu_custom_call.1} parent=1 // pred_check
      _
    $region3: #{tpu_custom_call.1} parent=1 // pred_check_branch
      %14 = sbr.rel (0) target = $region5
    $region4: #{tpu_custom_call.1} parent=1 // pred_region
      %16 = vsyncadd [#allocation4], 0
      %s17 = sshll.u32 %s0, 4
      %s18 = int_to_ptr.hbm [resolvable:$true] %s17
      %s19 = sshll.u32 [#allocation3], 4
      %s20 = int_to_ptr.vmem [resolvable:$true] %s19
      %25 = dma.hbm_to_vmem [thread:$0]  %s18, 256, %s20, [#allocation4], 128, 128, 8
    $region5: #{tpu_custom_call.1} parent=1 // pred_fallthru
      _
    // Predicated region
    $region6: #{tpu_custom_call.1} parent=1 // pred_check
      _
    $region7: #{tpu_custom_call.1} parent=1 // pred_check_branch
      %27 = sbr.rel (0) target = $region9
    $region8: #{tpu_custom_call.1} parent=1 // pred_region
      %29 = vsyncadd [#allocation7], 0
      %s30 = sshll.u32 %s1, 4
      %s31 = int_to_ptr.hbm [resolvable:$true] %s30
      %s32 = sshll.u32 [#allocation6], 4
      %s33 = int_to_ptr.vmem [resolvable:$true] %s32
      %38 = dma.hbm_to_vmem [thread:$0]  %s31, 512, %s33, [#allocation7], 128, 128, 8
    $region9: #{tpu_custom_call.1} parent=1 // pred_fallthru
      _
    // Predicated region
    $region10: #{tpu_custom_call.1} parent=1 // pred_check
      _
    $region11: #{tpu_custom_call.1} parent=1 // pred_check_branch
      %40 = sbr.rel (0) target = $region13
    $region12: #{tpu_custom_call.1} parent=1 // pred_region
      _
    $region13: #{tpu_custom_call.1} parent=1 // pred_fallthru
      _
    // Predicated region
    $region14: #{tpu_custom_call.1} parent=1 // pred_check
      _
    $region15: #{tpu_custom_call.1} parent=1 // pred_check_branch
      %42 = sbr.rel (0) target = $region17
    $region16: #{tpu_custom_call.1} parent=1 // pred_region
      %44 = vsyncadd [#allocation7], 0
      %s45 = sshll.u32 %s3, 4
      %s46 = int_to_ptr.hbm [resolvable:$true] %s45
      %s47 = sshll.u32 [#allocation8], 4
      %s48 = int_to_ptr.vmem [resolvable:$true] %s47
      %53 = dma.hbm_to_vmem [thread:$0]  %s46, 512, %s48, [#allocation7], 128, 128, 8
    $region17: #{tpu_custom_call.1} parent=1 // pred_fallthru
      _
    // Predicated region
    $region18: #{tpu_custom_call.1} parent=1 // pred_check
      _
    $region19: #{tpu_custom_call.1} parent=1 // pred_check_branch
      %55 = sbr.rel (0) target = $region21
    $region20: #{tpu_custom_call.1} parent=1 // pred_region
      _
    $region21: #{tpu_custom_call.1} parent=1 // pred_fallthru
      _
    // Predicated region
    $region22: #{tpu_custom_call.1} parent=1 // pred_check
      _
    $region23: #{tpu_custom_call.1} parent=1 // pred_check_branch
      %57 = sbr.rel (0) target = $region25
    $region24: #{tpu_custom_call.1} parent=1 // pred_region
      %59 = dma.done [#allocation4], 256
    $region25: #{tpu_custom_call.1} parent=1 // pred_fallthru
      _
    // Predicated region
    $region26: #{tpu_custom_call.1} parent=1 // pred_check
      _
    $region27: #{tpu_custom_call.1} parent=1 // pred_check_branch
      %61 = sbr.rel (0) target = $region29
    $region28: #{tpu_custom_call.1} parent=1 // pred_region
      %63 = dma.done [#allocation7], 512
    $region29: #{tpu_custom_call.1} parent=1 // pred_fallthru
      _
    // Predicated region
    $region30: #{tpu_custom_call.1} parent=1 // pred_check
      _
    $region31: #{tpu_custom_call.1} parent=1 // pred_check_branch
      %65 = sbr.rel (0) target = $region33
    $region32: #{tpu_custom_call.1} parent=1 // pred_region
      %67 = dma.done [#allocation7], 512
    $region33: #{tpu_custom_call.1} parent=1 // pred_fallthru
      _
    %v68 = vld [vmem:[#allocation3] sm:$0xff]
    %v69 = vld [vmem:[#allocation3 + $0x8] sm:$0xff]
    %v70 = vld [vmem:[#allocation6] sm:$0xff]
    %v71 = vld [vmem:[#allocation6 + $0x8] sm:$0xff]
    %v72 = vld [vmem:[#allocation6 + $0x10] sm:$0xff]
    %v73 = vld [vmem:[#allocation6 + $0x18] sm:$0xff]
    %v74 = vld [vmem:[#allocation8] sm:$0xff]
    %v75 = vld [vmem:[#allocation8 + $0x8] sm:$0xff]
    %v76 = vld [vmem:[#allocation8 + $0x10] sm:$0xff]
    %v77 = vld [vmem:[#allocation8 + $0x18] sm:$0xff]
    %v78 = vld [vmem:[%s2] sm:$0x1]
    %v80 = vperm.slane %v78, 0
    %vm82 = vcmask 261120
    %v84 = vsel %vm82, %v68, 0
    %86 = vmatpush.msra.mxu0 0.0
    %87 = vmatpush.msra.mxu0 0.0
    %88 = vmatpush.msra.mxu0 0.0
    %89 = vmatpush.msra.mxu0 0.0
    %90 = vmatpush.msra.mxu0 0.0
    %91 = vmatpush.msra.mxu0 0.0
    %92 = vmatpush.msra.mxu0 0.0
    %93 = vmatpush.msra.mxu0 0.0
    %94 = vmatpush.msra.mxu0 0.0
    %95 = vmatpush.msra.mxu0 0.0
    %96 = vmatpush.msra.mxu0 0.0
    %97 = vmatpush.msra.mxu0 0.0
    %98 = vmatpush.msra.mxu0 %v73
    %99 = vmatpush.msra.mxu0 %v72
    %100 = vmatpush.msra.mxu0 %v71
    %101 = vmatpush.msra.mxu0 %v70
    %102 = vmatmul.f32.gmra.mxu0 %v84
    %v103 = vpop.f32.mrf.mxu0
    %v104 = vadd.f32 %v80, %v103
    %105 = vdwg.mxu0
    %v107 = vsel %vm82, %v69, 0
    %109 = vmatpush.msra.mxu0 0.0
    %110 = vmatpush.msra.mxu0 0.0
    %111 = vmatpush.msra.mxu0 0.0
    %112 = vmatpush.msra.mxu0 0.0
    %113 = vmatpush.msra.mxu0 0.0
    %114 = vmatpush.msra.mxu0 0.0
    %115 = vmatpush.msra.mxu0 0.0
    %116 = vmatpush.msra.mxu0 0.0
    %117 = vmatpush.msra.mxu0 0.0
    %118 = vmatpush.msra.mxu0 0.0
    %119 = vmatpush.msra.mxu0 0.0
    %120 = vmatpush.msra.mxu0 0.0
    %121 = vmatpush.msra.mxu0 %v73
    %122 = vmatpush.msra.mxu0 %v72
    %123 = vmatpush.msra.mxu0 %v71
    %124 = vmatpush.msra.mxu0 %v70
    %125 = vmatmul.f32.gmra.mxu0 %v107
    %v126 = vpop.f32.mrf.mxu0
    %v127 = vadd.f32 %v80, %v126
    %128 = vdwg.mxu0
    %v129 = vlaneseq
    %v130 = vshrl.u32 %v129, 7
    %v131 = vlaneseq
    %v132 = vand.u32 %v131, 127
    %vm133 = vcmp.le.s32.totalorder %v132, %v130
    %135 = vrot.lane.b32.xlu0 %v104, 96
    %v136 = vpop.permute.xlu0 %135
    %vm137 = vcmask 64512
    %v138 = vsel %vm137, %v104, 0
    %v140 = vsel %vm137, %v136, 0
    %142 = vmatpush.xpose.msra.mxu0 0.0
    %143 = vmatpush.xpose.msra.mxu0 0.0
    %144 = vmatpush.xpose.msra.mxu0 0.0
    %145 = vmatpush.xpose.msra.mxu0 0.0
    %146 = vmatpush.xpose.msra.mxu0 0.0
    %147 = vmatpush.xpose.msra.mxu0 0.0
    %148 = vmatpush.xpose.msra.mxu0 0.0
    %149 = vmatpush.xpose.msra.mxu0 0.0
    %150 = vmatpush.xpose.msra.mxu0 0.0
    %151 = vmatpush.xpose.msra.mxu0 0.0
    %152 = vmatpush.xpose.msra.mxu0 0.0
    %153 = vmatpush.xpose.msra.mxu0 0.0
    %154 = vmatpush.xpose.msra.mxu0 0.0
    %155 = vmatpush.xpose.msra.mxu0 0.0
    %156 = vmatpush.xpose.msra.mxu0 0.0
    %157 = vmatpush.xpose.msra.mxu0 %v140
    %158 = vmatmul.f32.gmra.mxu0 %v138
    %v159 = vpop.f32.mrf.mxu0
    %v160 = vadd.f32 0.0, %v159
    %161 = vdwg.mxu0
    %163 = vrot.lane.b32.xlu0 %v127, 96
    %v164 = vpop.permute.xlu0 %163
    %v165 = vsel %vm137, %v127, 0
    %v167 = vsel %vm137, %v164, 0
    %169 = vmatpush.xpose.msra.mxu0 0.0
    %170 = vmatpush.xpose.msra.mxu0 0.0
    %171 = vmatpush.xpose.msra.mxu0 0.0
    %172 = vmatpush.xpose.msra.mxu0 0.0
    %173 = vmatpush.xpose.msra.mxu0 0.0
    %174 = vmatpush.xpose.msra.mxu0 0.0
    %175 = vmatpush.xpose.msra.mxu0 0.0
    %176 = vmatpush.xpose.msra.mxu0 0.0
    %177 = vmatpush.xpose.msra.mxu0 0.0
    %178 = vmatpush.xpose.msra.mxu0 0.0
    %179 = vmatpush.xpose.msra.mxu0 0.0
    %180 = vmatpush.xpose.msra.mxu0 0.0
    %181 = vmatpush.xpose.msra.mxu0 0.0
    %182 = vmatpush.xpose.msra.mxu0 0.0
    %183 = vmatpush.xpose.msra.mxu0 0.0
    %184 = vmatpush.xpose.msra.mxu0 %v167
    %185 = vmatmul.f32.gmra.mxu0 %v165
    %v186 = vpop.f32.mrf.mxu0
    %v187 = vadd.f32 0.0, %v186
    %188 = vdwg.mxu0
    %v189 = vmul.f32 %v160, 0.35355338
    %v190 = vmul.f32 %v187, 0.35355338
    %v191 = vsel %vm133, 1, 0
    %vm192 = vcmp.eq.s32.totalorder %v191, 1
    %v193 = vsel %vm192, %v189, -1e+30
    %v194 = vsel %vm192, %v190, -1e+30
    %v195 = vsel %vm137, %v193, -inf
    %196 = vmax.xlane.f32.xlu0 %v195
    %v197 = vpop.xlane.xlu0 %196
    %v198 = vsel %vm137, %v194, -inf
    %199 = vmax.xlane.f32.xlu0 %v198
    %v200 = vpop.xlane.xlu0 %199
    %v201 = vsub.f32 %v193, %v197
    %v202 = vsub.f32 %v194, %v200
    %v203 = vmul.f32 %v201, 1.442695
    %v204 = vpow.pop %v203
    %v205 = vmul.f32 %v202, 1.442695
    %v206 = vpow.pop %v205
    %v207 = vsel %vm137, %v204, 0.0
    %208 = vadd.xlane.f32.xlu0 %v207
    %v209 = vpop.xlane.xlu0 %208
    %v210 = vsel %vm137, %v206, 0.0
    %211 = vadd.xlane.f32.xlu0 %v210
    %v212 = vpop.xlane.xlu0 %211
    %v213 = vrcp.pop %v209
    %v214 = vrcp.pop %v212
    %v215 = vmul.f32 %v204, %v213
    %v216 = vmul.f32 %v206, %v214
    %217 = vrot.lane.b32.xlu0 %v104, 64
    %v218 = vpop.permute.xlu0 %217
    %v221 = vsel %vm137, %v215, 0
    %223 = vmatpush.msra.mxu0 0.0
    %224 = vmatpush.msra.mxu0 0.0
    %225 = vmatpush.msra.mxu0 0.0
    %226 = vmatpush.msra.mxu0 0.0
    %227 = vmatpush.msra.mxu0 0.0
    %228 = vmatpush.msra.mxu0 0.0
    %229 = vmatpush.msra.mxu0 0.0
    %230 = vmatpush.msra.mxu0 0.0
    %231 = vmatpush.msra.mxu0 0.0
    %232 = vmatpush.msra.mxu0 0.0
    %233 = vmatpush.msra.mxu0 0.0
    %234 = vmatpush.msra.mxu0 0.0
    %235 = vmatpush.msra.mxu0 0.0
    %236 = vmatpush.msra.mxu0 0.0
    %237 = vmatpush.msra.mxu0 0.0
    %238 = vmatpush.msra.mxu0 %v218
    %239 = vmatmul.f32.gmra.mxu0 %v221
    %v240 = vpop.f32.mrf.mxu0
    %v241 = vadd.f32 0.0, %v240
    %242 = vdwg.mxu0
    %243 = vrot.lane.b32.xlu0 %v127, 64
    %v244 = vpop.permute.xlu0 %243
    %v247 = vsel %vm137, %v216, 0
    %249 = vmatpush.msra.mxu0 0.0
    %250 = vmatpush.msra.mxu0 0.0
    %251 = vmatpush.msra.mxu0 0.0
    %252 = vmatpush.msra.mxu0 0.0
    %253 = vmatpush.msra.mxu0 0.0
    %254 = vmatpush.msra.mxu0 0.0
    %255 = vmatpush.msra.mxu0 0.0
    %256 = vmatpush.msra.mxu0 0.0
    %257 = vmatpush.msra.mxu0 0.0
    %258 = vmatpush.msra.mxu0 0.0
    %259 = vmatpush.msra.mxu0 0.0
    %260 = vmatpush.msra.mxu0 0.0
    %261 = vmatpush.msra.mxu0 0.0
    %262 = vmatpush.msra.mxu0 0.0
    %263 = vmatpush.msra.mxu0 0.0
    %264 = vmatpush.msra.mxu0 %v244
    %265 = vmatmul.f32.gmra.mxu0 %v247
    %v266 = vpop.f32.mrf.mxu0
    %v267 = vadd.f32 0.0, %v266
    %268 = vdwg.mxu0
    %269 = vst.msk [vmem:[#allocation2] sm:$0xff] %vm137, %v241
    %270 = vst.msk [vmem:[#allocation2 + $0x8] sm:$0xff] %vm137, %v267
    %271 = vrot.lane.b32.xlu0 %v104, 120
    %v272 = vpop.permute.xlu0 %271
    %273 = vrot.lane.b32.xlu0 %v104, 88
    %v274 = vpop.permute.xlu0 %273
    %v275 = vsel %vm137, %v272, 0
    %v277 = vsel %vm137, %v274, 0
    %279 = vmatpush.xpose.msra.mxu0 0.0
    %280 = vmatpush.xpose.msra.mxu0 0.0
    %281 = vmatpush.xpose.msra.mxu0 0.0
    %282 = vmatpush.xpose.msra.mxu0 0.0
    %283 = vmatpush.xpose.msra.mxu0 0.0
    %284 = vmatpush.xpose.msra.mxu0 0.0
    %285 = vmatpush.xpose.msra.mxu0 0.0
    %286 = vmatpush.xpose.msra.mxu0 0.0
    %287 = vmatpush.xpose.msra.mxu0 0.0
    %288 = vmatpush.xpose.msra.mxu0 0.0
    %289 = vmatpush.xpose.msra.mxu0 0.0
    %290 = vmatpush.xpose.msra.mxu0 0.0
    %291 = vmatpush.xpose.msra.mxu0 0.0
    %292 = vmatpush.xpose.msra.mxu0 0.0
    %293 = vmatpush.xpose.msra.mxu0 0.0
    %294 = vmatpush.xpose.msra.mxu0 %v277
    %295 = vmatmul.f32.gmra.mxu0 %v275
    %v296 = vpop.f32.mrf.mxu0
    %v297 = vadd.f32 0.0, %v296
    %298 = vdwg.mxu0
    %299 = vrot.lane.b32.xlu0 %v127, 120
    %v300 = vpop.permute.xlu0 %299
    %301 = vrot.lane.b32.xlu0 %v127, 88
    %v302 = vpop.permute.xlu0 %301
    %v303 = vsel %vm137, %v300, 0
    %v305 = vsel %vm137, %v302, 0
    %307 = vmatpush.xpose.msra.mxu0 0.0
    %308 = vmatpush.xpose.msra.mxu0 0.0
    %309 = vmatpush.xpose.msra.mxu0 0.0
    %310 = vmatpush.xpose.msra.mxu0 0.0
    %311 = vmatpush.xpose.msra.mxu0 0.0
    %312 = vmatpush.xpose.msra.mxu0 0.0
    %313 = vmatpush.xpose.msra.mxu0 0.0
    %314 = vmatpush.xpose.msra.mxu0 0.0
    %315 = vmatpush.xpose.msra.mxu0 0.0
    %316 = vmatpush.xpose.msra.mxu0 0.0
    %317 = vmatpush.xpose.msra.mxu0 0.0
    %318 = vmatpush.xpose.msra.mxu0 0.0
    %319 = vmatpush.xpose.msra.mxu0 0.0
    %320 = vmatpush.xpose.msra.mxu0 0.0
    %321 = vmatpush.xpose.msra.mxu0 0.0
    %322 = vmatpush.xpose.msra.mxu0 %v305
    %323 = vmatmul.f32.gmra.mxu0 %v303
    %v324 = vpop.f32.mrf.mxu0
    %v325 = vadd.f32 0.0, %v324
    %326 = vdwg.mxu0
    %v327 = vmul.f32 %v297, 0.35355338
    %v328 = vmul.f32 %v325, 0.35355338
    %v329 = vsel %vm192, %v327, -1e+30
    %v330 = vsel %vm192, %v328, -1e+30
    %v331 = vsel %vm137, %v329, -inf
    %332 = vmax.xlane.f32.xlu0 %v331
    %v333 = vpop.xlane.xlu0 %332
    %v334 = vsel %vm137, %v330, -inf
    %335 = vmax.xlane.f32.xlu0 %v334
    %v336 = vpop.xlane.xlu0 %335
    %v337 = vsub.f32 %v329, %v333
    %v338 = vsub.f32 %v330, %v336
    %v339 = vmul.f32 %v337, 1.442695
    %v340 = vpow.pop %v339
    %v341 = vmul.f32 %v338, 1.442695
    %v342 = vpow.pop %v341
    %v343 = vsel %vm137, %v340, 0.0
    %344 = vadd.xlane.f32.xlu0 %v343
    %v345 = vpop.xlane.xlu0 %344
    %v346 = vsel %vm137, %v342, 0.0
    %347 = vadd.xlane.f32.xlu0 %v346
    %v348 = vpop.xlane.xlu0 %347
    %v349 = vrcp.pop %v345
    %v350 = vrcp.pop %v348
    %v351 = vmul.f32 %v340, %v349
    %v352 = vmul.f32 %v342, %v350
    %353 = vrot.lane.b32.xlu0 %v104, 56
    %v354 = vpop.permute.xlu0 %353
    %v357 = vsel %vm137, %v351, 0
    %359 = vmatpush.msra.mxu0 0.0
    %360 = vmatpush.msra.mxu0 0.0
    %361 = vmatpush.msra.mxu0 0.0
    %362 = vmatpush.msra.mxu0 0.0
    %363 = vmatpush.msra.mxu0 0.0
    %364 = vmatpush.msra.mxu0 0.0
    %365 = vmatpush.msra.mxu0 0.0
    %366 = vmatpush.msra.mxu0 0.0
    %367 = vmatpush.msra.mxu0 0.0
    %368 = vmatpush.msra.mxu0 0.0
    %369 = vmatpush.msra.mxu0 0.0
    %370 = vmatpush.msra.mxu0 0.0
    %371 = vmatpush.msra.mxu0 0.0
    %372 = vmatpush.msra.mxu0 0.0
    %373 = vmatpush.msra.mxu0 0.0
    %374 = vmatpush.msra.mxu0 %v354
    %375 = vmatmul.f32.gmra.mxu0 %v357
    %v376 = vpop.f32.mrf.mxu0
    %v377 = vadd.f32 0.0, %v376
    %378 = vdwg.mxu0
    %379 = vrot.lane.b32.xlu0 %v127, 56
    %v380 = vpop.permute.xlu0 %379
    %v383 = vsel %vm137, %v352, 0
    %385 = vmatpush.msra.mxu0 0.0
    %386 = vmatpush.msra.mxu0 0.0
    %387 = vmatpush.msra.mxu0 0.0
    %388 = vmatpush.msra.mxu0 0.0
    %389 = vmatpush.msra.mxu0 0.0
    %390 = vmatpush.msra.mxu0 0.0
    %391 = vmatpush.msra.mxu0 0.0
    %392 = vmatpush.msra.mxu0 0.0
    %393 = vmatpush.msra.mxu0 0.0
    %394 = vmatpush.msra.mxu0 0.0
    %395 = vmatpush.msra.mxu0 0.0
    %396 = vmatpush.msra.mxu0 0.0
    %397 = vmatpush.msra.mxu0 0.0
    %398 = vmatpush.msra.mxu0 0.0
    %399 = vmatpush.msra.mxu0 0.0
    %400 = vmatpush.msra.mxu0 %v380
    %401 = vmatmul.f32.gmra.mxu0 %v383
    %v402 = vpop.f32.mrf.mxu0
    %v403 = vadd.f32 0.0, %v402
    %404 = vdwg.mxu0
    %407 = vrot.lane.b32.xlu0 %v377, 8
    %v408 = vpop.permute.xlu0 %407
    %409 = vrot.lane.b32.xlu0 %v403, 8
    %v410 = vpop.permute.xlu0 %409
    %vm413 = vcmask 130112
    %414 = vst.msk [vmem:[#allocation2] sm:$0xff] %vm413, %v408
    %415 = vst.msk [vmem:[#allocation2 + $0x8] sm:$0xff] %vm413, %v410
    %416 = vrot.lane.b32.xlu0 %v104, 112
    %v417 = vpop.permute.xlu0 %416
    %418 = vrot.lane.b32.xlu0 %v104, 80
    %v419 = vpop.permute.xlu0 %418
    %v420 = vsel %vm137, %v417, 0
    %v422 = vsel %vm137, %v419, 0
    %424 = vmatpush.xpose.msra.mxu0 0.0
    %425 = vmatpush.xpose.msra.mxu0 0.0
    %426 = vmatpush.xpose.msra.mxu0 0.0
    %427 = vmatpush.xpose.msra.mxu0 0.0
    %428 = vmatpush.xpose.msra.mxu0 0.0
    %429 = vmatpush.xpose.msra.mxu0 0.0
    %430 = vmatpush.xpose.msra.mxu0 0.0
    %431 = vmatpush.xpose.msra.mxu0 0.0
    %432 = vmatpush.xpose.msra.mxu0 0.0
    %433 = vmatpush.xpose.msra.mxu0 0.0
    %434 = vmatpush.xpose.msra.mxu0 0.0
    %435 = vmatpush.xpose.msra.mxu0 0.0
    %436 = vmatpush.xpose.msra.mxu0 0.0
    %437 = vmatpush.xpose.msra.mxu0 0.0
    %438 = vmatpush.xpose.msra.mxu0 0.0
    %439 = vmatpush.xpose.msra.mxu0 %v422
    %440 = vmatmul.f32.gmra.mxu0 %v420
    %v441 = vpop.f32.mrf.mxu0
    %v442 = vadd.f32 0.0, %v441
    %443 = vdwg.mxu0
    %444 = vrot.lane.b32.xlu0 %v127, 112
    %v445 = vpop.permute.xlu0 %444
    %446 = vrot.lane.b32.xlu0 %v127, 80
    %v447 = vpop.permute.xlu0 %446
    %v448 = vsel %vm137, %v445, 0
    %v450 = vsel %vm137, %v447, 0
    %452 = vmatpush.xpose.msra.mxu0 0.0
    %453 = vmatpush.xpose.msra.mxu0 0.0
    %454 = vmatpush.xpose.msra.mxu0 0.0
    %455 = vmatpush.xpose.msra.mxu0 0.0
    %456 = vmatpush.xpose.msra.mxu0 0.0
    %457 = vmatpush.xpose.msra.mxu0 0.0
    %458 = vmatpush.xpose.msra.mxu0 0.0
    %459 = vmatpush.xpose.msra.mxu0 0.0
    %460 = vmatpush.xpose.msra.mxu0 0.0
    %461 = vmatpush.xpose.msra.mxu0 0.0
    %462 = vmatpush.xpose.msra.mxu0 0.0
    %463 = vmatpush.xpose.msra.mxu0 0.0
    %464 = vmatpush.xpose.msra.mxu0 0.0
    %465 = vmatpush.xpose.msra.mxu0 0.0
    %466 = vmatpush.xpose.msra.mxu0 0.0
    %467 = vmatpush.xpose.msra.mxu0 %v450
    %468 = vmatmul.f32.gmra.mxu0 %v448
    %v469 = vpop.f32.mrf.mxu0
    %v470 = vadd.f32 0.0, %v469
    %471 = vdwg.mxu0
    %v472 = vmul.f32 %v442, 0.35355338
    %v473 = vmul.f32 %v470, 0.35355338
    %v474 = vsel %vm192, %v472, -1e+30
    %v475 = vsel %vm192, %v473, -1e+30
    %v476 = vsel %vm137, %v474, -inf
    %477 = vmax.xlane.f32.xlu0 %v476
    %v478 = vpop.xlane.xlu0 %477
    %v479 = vsel %vm137, %v475, -inf
    %480 = vmax.xlane.f32.xlu0 %v479
    %v481 = vpop.xlane.xlu0 %480
    %v482 = vsub.f32 %v474, %v478
    %v483 = vsub.f32 %v475, %v481
    %v484 = vmul.f32 %v482, 1.442695
    %v485 = vpow.pop %v484
    %v486 = vmul.f32 %v483, 1.442695
    %v487 = vpow.pop %v486
    %v488 = vsel %vm137, %v485, 0.0
    %489 = vadd.xlane.f32.xlu0 %v488
    %v490 = vpop.xlane.xlu0 %489
    %v491 = vsel %vm137, %v487, 0.0
    %492 = vadd.xlane.f32.xlu0 %v491
    %v493 = vpop.xlane.xlu0 %492
    %v494 = vrcp.pop %v490
    %v495 = vrcp.pop %v493
    %v496 = vmul.f32 %v485, %v494
    %v497 = vmul.f32 %v487, %v495
    %498 = vrot.lane.b32.xlu0 %v104, 48
    %v499 = vpop.permute.xlu0 %498
    %v502 = vsel %vm137, %v496, 0
    %504 = vmatpush.msra.mxu0 0.0
    %505 = vmatpush.msra.mxu0 0.0
    %506 = vmatpush.msra.mxu0 0.0
    %507 = vmatpush.msra.mxu0 0.0
    %508 = vmatpush.msra.mxu0 0.0
    %509 = vmatpush.msra.mxu0 0.0
    %510 = vmatpush.msra.mxu0 0.0
    %511 = vmatpush.msra.mxu0 0.0
    %512 = vmatpush.msra.mxu0 0.0
    %513 = vmatpush.msra.mxu0 0.0
    %514 = vmatpush.msra.mxu0 0.0
    %515 = vmatpush.msra.mxu0 0.0
    %516 = vmatpush.msra.mxu0 0.0
    %517 = vmatpush.msra.mxu0 0.0
    %518 = vmatpush.msra.mxu0 0.0
    %519 = vmatpush.msra.mxu0 %v499
    %520 = vmatmul.f32.gmra.mxu0 %v502
    %v521 = vpop.f32.mrf.mxu0
    %v522 = vadd.f32 0.0, %v521
    %523 = vdwg.mxu0
    %524 = vrot.lane.b32.xlu0 %v127, 48
    %v525 = vpop.permute.xlu0 %524
    %v528 = vsel %vm137, %v497, 0
    %530 = vmatpush.msra.mxu0 0.0
    %531 = vmatpush.msra.mxu0 0.0
    %532 = vmatpush.msra.mxu0 0.0
    %533 = vmatpush.msra.mxu0 0.0
    %534 = vmatpush.msra.mxu0 0.0
    %535 = vmatpush.msra.mxu0 0.0
    %536 = vmatpush.msra.mxu0 0.0
    %537 = vmatpush.msra.mxu0 0.0
    %538 = vmatpush.msra.mxu0 0.0
    %539 = vmatpush.msra.mxu0 0.0
    %540 = vmatpush.msra.mxu0 0.0
    %541 = vmatpush.msra.mxu0 0.0
    %542 = vmatpush.msra.mxu0 0.0
    %543 = vmatpush.msra.mxu0 0.0
    %544 = vmatpush.msra.mxu0 0.0
    %545 = vmatpush.msra.mxu0 %v525
    %546 = vmatmul.f32.gmra.mxu0 %v528
    %v547 = vpop.f32.mrf.mxu0
    %v548 = vadd.f32 0.0, %v547
    %549 = vdwg.mxu0
    %552 = vrot.lane.b32.xlu0 %v522, 16
    %v553 = vpop.permute.xlu0 %552
    %554 = vrot.lane.b32.xlu0 %v548, 16
    %v555 = vpop.permute.xlu0 %554
    %vm558 = vcmask 195712
    %559 = vst.msk [vmem:[#allocation2] sm:$0xff] %vm558, %v553
    %560 = vst.msk [vmem:[#allocation2 + $0x8] sm:$0xff] %vm558, %v555
    %561 = vrot.lane.b32.xlu0 %v104, 104
    %v562 = vpop.permute.xlu0 %561
    %563 = vrot.lane.b32.xlu0 %v104, 72
    %v564 = vpop.permute.xlu0 %563
    %v565 = vsel %vm137, %v562, 0
    %v567 = vsel %vm137, %v564, 0
    %569 = vmatpush.xpose.msra.mxu0 0.0
    %570 = vmatpush.xpose.msra.mxu0 0.0
    %571 = vmatpush.xpose.msra.mxu0 0.0
    %572 = vmatpush.xpose.msra.mxu0 0.0
    %573 = vmatpush.xpose.msra.mxu0 0.0
    %574 = vmatpush.xpose.msra.mxu0 0.0
    %575 = vmatpush.xpose.msra.mxu0 0.0
    %576 = vmatpush.xpose.msra.mxu0 0.0
    %577 = vmatpush.xpose.msra.mxu0 0.0
    %578 = vmatpush.xpose.msra.mxu0 0.0
    %579 = vmatpush.xpose.msra.mxu0 0.0
    %580 = vmatpush.xpose.msra.mxu0 0.0
    %581 = vmatpush.xpose.msra.mxu0 0.0
    %582 = vmatpush.xpose.msra.mxu0 0.0
    %583 = vmatpush.xpose.msra.mxu0 0.0
    %584 = vmatpush.xpose.msra.mxu0 %v567
    %585 = vmatmul.f32.gmra.mxu0 %v565
    %v586 = vpop.f32.mrf.mxu0
    %v587 = vadd.f32 0.0, %v586
    %588 = vdwg.mxu0
    %589 = vrot.lane.b32.xlu0 %v127, 104
    %v590 = vpop.permute.xlu0 %589
    %591 = vrot.lane.b32.xlu0 %v127, 72
    %v592 = vpop.permute.xlu0 %591
    %v593 = vsel %vm137, %v590, 0
    %v595 = vsel %vm137, %v592, 0
    %597 = vmatpush.xpose.msra.mxu0 0.0
    %598 = vmatpush.xpose.msra.mxu0 0.0
    %599 = vmatpush.xpose.msra.mxu0 0.0
    %600 = vmatpush.xpose.msra.mxu0 0.0
    %601 = vmatpush.xpose.msra.mxu0 0.0
    %602 = vmatpush.xpose.msra.mxu0 0.0
    %603 = vmatpush.xpose.msra.mxu0 0.0
    %604 = vmatpush.xpose.msra.mxu0 0.0
    %605 = vmatpush.xpose.msra.mxu0 0.0
    %606 = vmatpush.xpose.msra.mxu0 0.0
    %607 = vmatpush.xpose.msra.mxu0 0.0
    %608 = vmatpush.xpose.msra.mxu0 0.0
    %609 = vmatpush.xpose.msra.mxu0 0.0
    %610 = vmatpush.xpose.msra.mxu0 0.0
    %611 = vmatpush.xpose.msra.mxu0 0.0
    %612 = vmatpush.xpose.msra.mxu0 %v595
    %613 = vmatmul.f32.gmra.mxu0 %v593
    %v614 = vpop.f32.mrf.mxu0
    %v615 = vadd.f32 0.0, %v614
    %616 = vdwg.mxu0
    %v617 = vmul.f32 %v587, 0.35355338
    %v618 = vmul.f32 %v615, 0.35355338
    %v619 = vsel %vm192, %v617, -1e+30
    %v620 = vsel %vm192, %v618, -1e+30
    %v621 = vsel %vm137, %v619, -inf
    %622 = vmax.xlane.f32.xlu0 %v621
    %v623 = vpop.xlane.xlu0 %622
    %v624 = vsel %vm137, %v620, -inf
    %625 = vmax.xlane.f32.xlu0 %v624
    %v626 = vpop.xlane.xlu0 %625
    %v627 = vsub.f32 %v619, %v623
    %v628 = vsub.f32 %v620, %v626
    %v629 = vmul.f32 %v627, 1.442695
    %v630 = vpow.pop %v629
    %v631 = vmul.f32 %v628, 1.442695
    %v632 = vpow.pop %v631
    %v633 = vsel %vm137, %v630, 0.0
    %634 = vadd.xlane.f32.xlu0 %v633
    %v635 = vpop.xlane.xlu0 %634
    %v636 = vsel %vm137, %v632, 0.0
    %637 = vadd.xlane.f32.xlu0 %v636
    %v638 = vpop.xlane.xlu0 %637
    %v639 = vrcp.pop %v635
    %v640 = vrcp.pop %v638
    %v641 = vmul.f32 %v630, %v639
    %v642 = vmul.f32 %v632, %v640
    %643 = vrot.lane.b32.xlu0 %v104, 40
    %v644 = vpop.permute.xlu0 %643
    %v647 = vsel %vm137, %v641, 0
    %649 = vmatpush.msra.mxu0 0.0
    %650 = vmatpush.msra.mxu0 0.0
    %651 = vmatpush.msra.mxu0 0.0
    %652 = vmatpush.msra.mxu0 0.0
    %653 = vmatpush.msra.mxu0 0.0
    %654 = vmatpush.msra.mxu0 0.0
    %655 = vmatpush.msra.mxu0 0.0
    %656 = vmatpush.msra.mxu0 0.0
    %657 = vmatpush.msra.mxu0 0.0
    %658 = vmatpush.msra.mxu0 0.0
    %659 = vmatpush.msra.mxu0 0.0
    %660 = vmatpush.msra.mxu0 0.0
    %661 = vmatpush.msra.mxu0 0.0
    %662 = vmatpush.msra.mxu0 0.0
    %663 = vmatpush.msra.mxu0 0.0
    %664 = vmatpush.msra.mxu0 %v644
    %665 = vmatmul.f32.gmra.mxu0 %v647
    %v666 = vpop.f32.mrf.mxu0
    %v667 = vadd.f32 0.0, %v666
    %668 = vdwg.mxu0
    %669 = vrot.lane.b32.xlu0 %v127, 40
    %v670 = vpop.permute.xlu0 %669
    %v673 = vsel %vm137, %v642, 0
    %675 = vmatpush.msra.mxu0 0.0
    %676 = vmatpush.msra.mxu0 0.0
    %677 = vmatpush.msra.mxu0 0.0
    %678 = vmatpush.msra.mxu0 0.0
    %679 = vmatpush.msra.mxu0 0.0
    %680 = vmatpush.msra.mxu0 0.0
    %681 = vmatpush.msra.mxu0 0.0
    %682 = vmatpush.msra.mxu0 0.0
    %683 = vmatpush.msra.mxu0 0.0
    %684 = vmatpush.msra.mxu0 0.0
    %685 = vmatpush.msra.mxu0 0.0
    %686 = vmatpush.msra.mxu0 0.0
    %687 = vmatpush.msra.mxu0 0.0
    %688 = vmatpush.msra.mxu0 0.0
    %689 = vmatpush.msra.mxu0 0.0
    %690 = vmatpush.msra.mxu0 %v670
    %691 = vmatmul.f32.gmra.mxu0 %v673
    %v692 = vpop.f32.mrf.mxu0
    %v693 = vadd.f32 0.0, %v692
    %694 = vdwg.mxu0
    %697 = vrot.lane.b32.xlu0 %v667, 24
    %v698 = vpop.permute.xlu0 %697
    %699 = vrot.lane.b32.xlu0 %v693, 24
    %v700 = vpop.permute.xlu0 %699
    %vm703 = vcmask 261312
    %704 = vst.msk [vmem:[#allocation2] sm:$0xff] %vm703, %v698
    %705 = vst.msk [vmem:[#allocation2 + $0x8] sm:$0xff] %vm703, %v700
    %v706 = vld [vmem:[#allocation2] sm:$0xff]
    %v707 = vld [vmem:[#allocation2 + $0x8] sm:$0xff]
    %v708 = vld [vmem:[%s4] sm:$0x1]
    %v710 = vperm.slane %v708, 0
    %v713 = vsel %vm82, %v706, 0
    %715 = vmatpush.msra.mxu0 0.0
    %716 = vmatpush.msra.mxu0 0.0
    %717 = vmatpush.msra.mxu0 0.0
    %718 = vmatpush.msra.mxu0 0.0
    %719 = vmatpush.msra.mxu0 0.0
    %720 = vmatpush.msra.mxu0 0.0
    %721 = vmatpush.msra.mxu0 0.0
    %722 = vmatpush.msra.mxu0 0.0
    %723 = vmatpush.msra.mxu0 0.0
    %724 = vmatpush.msra.mxu0 0.0
    %725 = vmatpush.msra.mxu0 0.0
    %726 = vmatpush.msra.mxu0 0.0
    %727 = vmatpush.msra.mxu0 %v77
    %728 = vmatpush.msra.mxu0 %v76
    %729 = vmatpush.msra.mxu0 %v75
    %730 = vmatpush.msra.mxu0 %v74
    %731 = vmatmul.f32.gmra.mxu0 %v713
    %v732 = vpop.f32.mrf.mxu0
    %v733 = vadd.f32 %v710, %v732
    %734 = vdwg.mxu0
    %v736 = vsel %vm82, %v707, 0
    %738 = vmatpush.msra.mxu0 0.0
    %739 = vmatpush.msra.mxu0 0.0
    %740 = vmatpush.msra.mxu0 0.0
    %741 = vmatpush.msra.mxu0 0.0
    %742 = vmatpush.msra.mxu0 0.0
    %743 = vmatpush.msra.mxu0 0.0
    %744 = vmatpush.msra.mxu0 0.0
    %745 = vmatpush.msra.mxu0 0.0
    %746 = vmatpush.msra.mxu0 0.0
    %747 = vmatpush.msra.mxu0 0.0
    %748 = vmatpush.msra.mxu0 0.0
    %749 = vmatpush.msra.mxu0 0.0
    %750 = vmatpush.msra.mxu0 %v77
    %751 = vmatpush.msra.mxu0 %v76
    %752 = vmatpush.msra.mxu0 %v75
    %753 = vmatpush.msra.mxu0 %v74
    %754 = vmatmul.f32.gmra.mxu0 %v736
    %v755 = vpop.f32.mrf.mxu0
    %v756 = vadd.f32 %v710, %v755
    %757 = vdwg.mxu0
    %758 = vst.msk [vmem:[#allocation9] sm:$0xff] %vm82, %v733
    %759 = vst.msk [vmem:[#allocation9 + $0x8] sm:$0xff] %vm82, %v756
    // Predicated region
    $region34: #{tpu_custom_call.1} parent=1 // pred_check
      _
    $region35: #{tpu_custom_call.1} parent=1 // pred_check_branch
      %761 = sbr.rel (0) target = $region37
    $region36: #{tpu_custom_call.1} parent=1 // pred_region
      %763 = vsyncadd [#allocation5], 0
      %s764 = sshll.u32 [#allocation9], 4
      %s765 = int_to_ptr.vmem [resolvable:$true] %s764
      %s766 = sshll.u32 %s5, 4
      %s767 = int_to_ptr.hbm [resolvable:$true] %s766
      %772 = dma.vmem_to_hbm [thread:$0]  %s765, 256, %s767, [#allocation5], 128, 128, 8
    $region37: #{tpu_custom_call.1} parent=1 // pred_fallthru
      _
    // Predicated region
    $region38: #{tpu_custom_call.1} parent=1 // pred_check
      _
    $region39: #{tpu_custom_call.1} parent=1 // pred_check_branch
      %774 = sbr.rel (0) target = $region41
    $region40: #{tpu_custom_call.1} parent=1 // pred_region
      %776 = dma.done [#allocation5], 256
    $region41: #{tpu_custom_call.1} parent=1 // pred_fallthru
      _
    %777 = vsyncpa [#allocation4], 1
    %778 = vsyncpa [#allocation7], 1
    %779 = vsyncpa [#allocation5], 1

</llo_original>
